<compile_context>
chip_gen: v6e
topology: v6e:2x2x1
jax: 0.10.0
libtpu: 0.0.40
codegen_flags: <defaults>
</compile_context>

<pallas_src>
import math

import jax
import jax.numpy as jnp
from jax.experimental import pallas as pl
from jax.experimental.pallas import tpu as pltpu

# ---------------- static configuration (small synthetic shapes) ----------------
B = 2            # batch
CIN = 4          # in_channel
COUT = 8         # out_channel
K = 3            # kernel_size
H = W = 16       # spatial
HW = H * W       # 256
LANES = B * HW   # 512  -> fused lane axis (batch folded into lanes)
CKK = CIN * K * K            # 36 -> contraction dim, kept on the sublane axis
NUM_LANE_TILES = 2           # megacore split on v7x; ~free loop on v5e/v6e
LANE_TILE = LANES // NUM_LANE_TILES   # 256, lane-dense
STYLE_DIM = 512
PAD = K // 2
SCALE = 1.0 / math.sqrt(CIN * K * K)
EPS = 1e-8
NOISE_W = 0.1            # module inits NoiseInjection.weight = zeros(1); nonzero to exercise path
NEG_SLOPE = float(COUT)  # nn.LeakyReLU(out_channel) -> negative_slope = 8.0 (module quirk)


def styled_conv_kernel(wb_ref, xcol_ref, demod_ref, noise_ref, o_ref):
    """One grid step == one LANE_TILE-wide slab of the fused (batch*H*W) axis.

    wb_ref    : (COUT, CKK)        bf16  scale * base weight (batch-invariant)
    xcol_ref  : (CKK, LANE_TILE)   bf16  style-modulated, im2col'd activations
    demod_ref : (COUT, LANE_TILE)  f32   per-(batch, cout) demod, pre-expanded on lanes
    noise_ref : (1, LANE_TILE)     f32   noise map
    o_ref     : (COUT, LANE_TILE)  f32   output slab (lane dense, unmasked stores)
    """
    # Whole 3x3 modulated conv for this slab: one bf16 MXU matmul, f32 accumulation.
    acc = jnp.dot(wb_ref[...], xcol_ref[...], preferred_element_type=jnp.float32)
    # Demodulation as a post-matmul scale + noise injection (VPU).
    out = acc * demod_ref[...] + NOISE_W * noise_ref[...]
    # LeakyReLU with the module's nn.LeakyReLU(out_channel) slope quirk.
    o_ref[...] = jnp.where(out >= 0.0, out, NEG_SLOPE * out).astype(o_ref.dtype)


def _prepare_operands(x, style, noise, mod_weight, mod_bias, base_weight):
    """Wrapper-side layout / precompute glue (tiny GEMMs, im2col, bf16 casts)."""
    # Style modulation GEMM (B,512)@(512,CIN) -- hoisted out of the kernel.
    s = style @ mod_weight.T + mod_bias.reshape(1, CIN)              # (B, CIN) f32

    # Demodulation without materializing per-batch weights:
    #   demod[b,o] = rsqrt(SCALE^2 * sum_c s[b,c]^2 * sum_kk W[o,c,kk]^2 + eps)
    w_sq = jnp.sum(base_weight[0] ** 2, axis=(2, 3))                 # (COUT, CIN)
    demod = jax.lax.rsqrt((SCALE ** 2) * ((s ** 2) @ w_sq.T) + EPS)  # (B, COUT) f32
    # Expand onto the fused lane axis (lane index = b*HW + hw); tiny (8,512) array.
    demod_lanes = jnp.repeat(demod.T, HW, axis=1)                    # (COUT, LANES)

    # Batch-invariant weight, scale folded in, bf16 MXU operand.
    wb = (SCALE * base_weight[0].reshape(COUT, CKK)).astype(jnp.bfloat16)

    # Modulate the ACTIVATIONS (== modulating the weight), then im2col to
    # (CKK, B*HW): CKK on sublanes (36->40 pad), fully dense lanes.
    # TODO(synk): at real StyleGAN sizes drop wrapper im2col (9x activation HBM
    # inflation, blows v7x's 64 MiB VMEM) and instead accumulate the 9 taps
    # in-kernel from a padded input tile, with COUT/CKK tiled to 128/256 as an
    # 'arbitrary' reduction grid axis into a VMEM f32 scratch.
    x_mod = x * s[:, :, None, None]                                  # (B, CIN, H, W) f32
    x_pad = jnp.pad(x_mod, ((0, 0), (0, 0), (PAD, PAD), (PAD, PAD)))
    taps = [x_pad[:, :, kh:kh + H, kw:kw + W]
            for kh in range(K) for kw in range(K)]
    xcol = jnp.stack(taps, axis=2).reshape(B, CKK, HW)               # rows: c*9 + kh*3 + kw
    xcol = xcol.transpose(1, 0, 2).reshape(CKK, LANES)               # lanes: b*HW + hw
    xcol = xcol.astype(jnp.bfloat16)

    noise_flat = noise.reshape(1, LANES).astype(jnp.float32)         # lanes: b*HW + hw
    return wb, xcol, demod_lanes, noise_flat


def styled_conv(x, style, noise, mod_weight, mod_bias, base_weight):
    """x: (B, CIN, H, W), style: (B, 512), noise: (B, 1, H, W) -> (B, COUT, H, W)."""
    wb, xcol, demod_lanes, noise_flat = _prepare_operands(
        x, style, noise, mod_weight, mod_bias, base_weight)

    cost = pl.CostEstimate(
        flops=2 * COUT * CKK * LANES,
        transcendentals=0,
        bytes_accessed=(wb.size * 2 + xcol.size * 2 + demod_lanes.size * 4
                        + noise_flat.size * 4 + COUT * LANES * 4))

    out_flat = pl.pallas_call(
        styled_conv_kernel,
        out_shape=jax.ShapeDtypeStruct((COUT, LANES), jnp.float32),
        grid=(NUM_LANE_TILES,),
        in_specs=[
            pl.BlockSpec((COUT, CKK), lambda t: (0, 0)),            # batch-invariant weight
            pl.BlockSpec((CKK, LANE_TILE), lambda t: (0, t)),
            pl.BlockSpec((COUT, LANE_TILE), lambda t: (0, t)),
            pl.BlockSpec((1, LANE_TILE), lambda t: (0, t)),
        ],
        out_specs=pl.BlockSpec((COUT, LANE_TILE), lambda t: (0, t)),
        compiler_params=pltpu.CompilerParams(
            dimension_semantics=("parallel",),   # lane tiles shard across v7x's 2 TCs
            vmem_limit_bytes=32 * 1024 * 1024),
        cost_estimate=cost,
    )(wb, xcol, demod_lanes, noise_flat)

    # (COUT, B*HW) -> (B, COUT, H, W)
    return out_flat.reshape(COUT, B, H, W).transpose(1, 0, 2, 3)


def styled_conv_same_math(x, style, noise, mod_weight, mod_bias, base_weight):
    """Plain-JAX twin of the kernel dataflow (same bf16 operand rounding)."""
    wb, xcol, demod_lanes, noise_flat = _prepare_operands(
        x, style, noise, mod_weight, mod_bias, base_weight)
    acc = jnp.dot(wb, xcol, preferred_element_type=jnp.float32)
    out = acc * demod_lanes + NOISE_W * noise_flat
    out = jnp.where(out >= 0.0, out, NEG_SLOPE * out)
    return out.reshape(COUT, B, H, W).transpose(1, 0, 2, 3)


def styled_conv_reference(x, style, noise, mod_weight, mod_bias, base_weight):
    """Pure-JAX f32 reference mirroring the PyTorch module forward."""
    s = style @ mod_weight.T + mod_bias                        # (B, CIN)
    w = SCALE * base_weight * s[:, None, :, None, None]        # (B, COUT, CIN, K, K)
    demod = jax.lax.rsqrt(jnp.sum(w * w, axis=(2, 3, 4)) + EPS)
    w = w * demod[:, :, None, None, None]
    xp = jnp.pad(x, ((0, 0), (0, 0), (PAD, PAD), (PAD, PAD)))
    out = jnp.zeros((B, COUT, H, W), jnp.float32)
    for kh in range(K):
        for kw in range(K):
            out = out + jnp.einsum('boc,bchw->bohw',
                                   w[:, :, :, kh, kw],
                                   xp[:, :, kh:kh + H, kw:kw + W])
    out = out + NOISE_W * noise
    return jnp.where(out >= 0, out, NEG_SLOPE * out)


if __name__ == "__main__":
    key = jax.random.PRNGKey(0)
    k1, k2, k3, k4, k5, k6 = jax.random.split(key, 6)

    # Deterministic parameter init (shapes per the module __init__).
    base_weight = jax.random.normal(k1, (1, COUT, CIN, K, K), jnp.float32)
    mod_weight = 0.05 * jax.random.normal(k2, (CIN, STYLE_DIM), jnp.float32)
    mod_bias = 0.01 * jax.random.normal(k3, (CIN,), jnp.float32)

    # Inputs.
    x = jax.random.normal(k4, (B, CIN, H, W), jnp.float32)
    style = jax.random.normal(k5, (B, STYLE_DIM), jnp.float32)
    noise = jax.random.normal(k6, (B, 1, H, W), jnp.float32)

    args = (x, style, noise, mod_weight, mod_bias, base_weight)
    out = jax.block_until_ready(styled_conv(*args))
    assert out.shape == (B, COUT, H, W)

    # Tight check vs an identically-quantized plain-JAX twin (bf16 operands, f32
    # accumulation): only accumulation-order differences remain.
    ref_same = jax.block_until_ready(styled_conv_same_math(*args))
    tight_err = float(jnp.max(jnp.abs(out - ref_same)))
    assert tight_err < 1e-3, tight_err

    # Module-faithful f32 reference: tolerance reflects bf16 matmul-operand rounding
    # amplified by the LeakyReLU(out_channel)=8 slope quirk (checked relative to the
    # output scale).
    ref_f32 = jax.block_until_ready(styled_conv_reference(*args))
    abs_err = float(jnp.max(jnp.abs(out - ref_f32)))
    rel_err = abs_err / (float(jnp.max(jnp.abs(ref_f32))) + 1e-6)
    assert rel_err < 2e-2, (abs_err, rel_err)

    print("KERNEL_OK")
</pallas_src>

<mosaic_0001>
module attributes {stable_mosaic.version = 11 : i64} {
  func.func @styled_conv_kernel(%arg0: i32, %arg1: memref<8x36xbf16, #tpu.memory_space<vmem>>, %arg2: memref<36x256xbf16, #tpu.memory_space<vmem>>, %arg3: memref<8x256xf32, #tpu.memory_space<vmem>>, %arg4: memref<1x256xf32, #tpu.memory_space<vmem>>, %arg5: memref<8x256xf32, #tpu.memory_space<vmem>>) attributes {dimension_semantics = [#tpu.dimension_semantics<parallel>], iteration_bounds = array<i64: 2>, scalar_prefetch = 0 : i64, scratch_operands = 0 : i64, tpu.core_type = #tpu.core_type<tc>, window_params = [{pipeline_mode = #tpu.pipeline_mode<synchronous>, transform_indices = @transform_0, window_bounds = array<i64: 8, 36>}, {transform_indices = @transform_1, window_bounds = array<i64: 36, 256>}, {transform_indices = @transform_2, window_bounds = array<i64: 8, 256>}, {transform_indices = @transform_3, window_bounds = array<i64: 1, 256>}, {transform_indices = @transform_4, window_bounds = array<i64: 8, 256>}]} {
    %c0 = arith.constant 0 : index
    %c0_0 = arith.constant 0 : index
    %0 = vector.load %arg1[%c0, %c0_0] : memref<8x36xbf16, #tpu.memory_space<vmem>>, vector<8x36xbf16>
    %c0_1 = arith.constant 0 : index
    %c0_2 = arith.constant 0 : index
    %1 = vector.load %arg2[%c0_1, %c0_2] : memref<36x256xbf16, #tpu.memory_space<vmem>>, vector<36x256xbf16>
    %cst = arith.constant dense<0.000000e+00> : vector<8x256xf32>
    %2 = tpu.matmul %0, %1, %cst {dimension_numbers = #tpu.dot_dimension_numbers<[1], [0], [0], [1], [0, 0, 1, 1], [], []>} : vector<8x36xbf16>, vector<36x256xbf16>, vector<8x256xf32> -> vector<8x256xf32>
    %c0_3 = arith.constant 0 : index
    %c0_4 = arith.constant 0 : index
    %3 = vector.load %arg3[%c0_3, %c0_4] : memref<8x256xf32, #tpu.memory_space<vmem>>, vector<8x256xf32>
    %4 = arith.mulf %2, %3 : vector<8x256xf32>
    %c0_5 = arith.constant 0 : index
    %c0_6 = arith.constant 0 : index
    %5 = vector.load %arg4[%c0_5, %c0_6] : memref<1x256xf32, #tpu.memory_space<vmem>>, vector<1x256xf32>
    %cst_7 = arith.constant 1.000000e-01 : f32
    %6 = vector.broadcast %cst_7 : f32 to vector<1x256xf32>
    %7 = arith.mulf %6, %5 : vector<1x256xf32>
    %8 = vector.broadcast %7 : vector<1x256xf32> to vector<8x256xf32>
    %9 = arith.addf %4, %8 : vector<8x256xf32>
    %cst_8 = arith.constant 0.000000e+00 : f32
    %10 = vector.broadcast %cst_8 : f32 to vector<8x256xf32>
    %11 = arith.cmpf oge, %9, %10 : vector<8x256xf32>
    %cst_9 = arith.constant 8.000000e+00 : f32
    %12 = vector.broadcast %cst_9 : f32 to vector<8x256xf32>
    %13 = arith.mulf %12, %9 : vector<8x256xf32>
    %14 = arith.select %11, %9, %13 : vector<8x256xi1>, vector<8x256xf32>
    %c0_10 = arith.constant 0 : index
    %c0_11 = arith.constant 0 : index
    %15 = vector.load %arg5[%c0_10, %c0_11] : memref<8x256xf32, #tpu.memory_space<vmem>>, vector<8x256xf32>
    tpu.vector_store %arg5[%c0_10, %c0_11], %14 {strides = array<i32>} : memref<8x256xf32, #tpu.memory_space<vmem>>, vector<8x256xf32>,
    return
  }
  func.func @transform_0(%arg0: i32) -> (i32, i32) {
    %c0_i32 = arith.constant 0 : i32
    %c0_i32_0 = arith.constant 0 : i32
    %c0_i32_1 = arith.constant 0 : i32
    return %c0_i32, %c0_i32_0 : i32, i32
  }
  func.func @transform_1(%arg0: i32) -> (i32, i32) {
    %c0_i32 = arith.constant 0 : i32
    %c0_i32_0 = arith.constant 0 : i32
    return %c0_i32, %arg0 : i32, i32
  }
  func.func @transform_2(%arg0: i32) -> (i32, i32) {
    %c0_i32 = arith.constant 0 : i32
    %c0_i32_0 = arith.constant 0 : i32
    return %c0_i32, %arg0 : i32, i32
  }
  func.func @transform_3(%arg0: i32) -> (i32, i32) {
    %c0_i32 = arith.constant 0 : i32
    %c0_i32_0 = arith.constant 0 : i32
    return %c0_i32, %arg0 : i32, i32
  }
  func.func @transform_4(%arg0: i32) -> (i32, i32) {
    %c0_i32 = arith.constant 0 : i32
    %c0_i32_0 = arith.constant 0 : i32
    return %c0_i32, %arg0 : i32, i32
  }
}

</mosaic_0001>

<llo_original>
// kernel: tpu_custom_call.1
$region0: #{tpu_custom_call.1}
  #allocation0 [shape = 'u32[]', space=smem, size = 0x4, offset = 0x4, fixed_abs, tag = 'smem constant byte address 0x4 - core index']
  #allocation1 [shape = 'u32[144,128]{1,0:T(1,128)}', space=vmem, size = 0x12000, scoped, tag = 'internal scratch']
  %s0 = inlined_call_operand.hbm [shape: bf16[8,36], index: 0, kind: input, shape index: {}]
  %s1 = inlined_call_operand.hbm [shape: bf16[36,512], index: 1, kind: input, shape index: {}]
  %s2 = inlined_call_operand.hbm [shape: f32[8,512], index: 2, kind: input, shape index: {}]
  %s3 = inlined_call_operand.vmem [shape: f32[1,512], index: 3, kind: input, shape index: {}]
  %s4 = inlined_call_operand.hbm [shape: f32[8,512], index: 4, kind: output, shape index: {}]
  %s5 = sld [smem:[#allocation0]]
  $region61: #{tpu_custom_call.1} parent=0
    _
  %s7 = ssub.s32 1, %s5
  %s8 = scalar_select 0, %s7, %s5
  $region1: #{tpu_custom_call.1} parent=0
    #allocation2 [shape = 'u8[2048]{0}', space=vmem, size = 0x800, scoped, tag = 'input window, operand 0, single buffered']
    #allocation3 [shape = 's32[2]{0}', space=sflag, size = 0x8, scoped, tag = 'scoped memory for tpu_custom_call.1']
    #allocation4 [shape = 's32[2]{0}', space=sflag, size = 0x8, scoped, tag = 'scoped memory for tpu_custom_call.1']
    #allocation5 [shape = 'u8[40960]{0}', space=vmem, size = 0xa000, scoped, tag = 'input window, operand 1']
    #allocation6 [shape = 's32[2]{0}', space=sflag, size = 0x8, scoped, tag = 'scoped memory for tpu_custom_call.1']
    #allocation7 [shape = 'u8[16384]{0}', space=vmem, size = 0x4000, scoped, tag = 'input window, operand 2']
    #allocation8 [shape = 'u8[16384]{0}', space=vmem, size = 0x4000, scoped, tag = 'output window, operand 0']
    %9 = vsyncpa [#allocation3], 0
    %10 = vsyncpa [#allocation6], 0
    %s11 = scalar_lea.sflag [#allocation6], 1
    %12 = vsyncpa %s11, 0
    %13 = vsyncpa [#allocation4], 0
    %s14 = scalar_lea.sflag [#allocation4], 1
    %15 = vsyncpa %s14, 0
    loop: start=0, step=1, limit=4
    $region2: #{tpu_custom_call.1} parent=1 // loop_pre_header
      _
    $region3: #{tpu_custom_call.1} parent=1 // loop_header
      %s17 = sphi 0, %s21
      %p18 = scmp.ge.s32.totalorder %s17, 4
      %s25 = sphi 0, %s25
      %s27 = sphi 0, %s25
      %s28 = sphi 0, %s27
      %s42 = sphi 0, %s28
      %s48 = sphi 0, %s50
      %s51 = sphi 0, %s48
      %s52 = sphi 0, %s51
      %s68 = sphi 0, %s52
      %s74 = sphi 0, %s76
      %s77 = sphi 0, %s74
      %s78 = sphi 0, %s77
      %s94 = sphi 0, %s78
      %s100 = sphi 0, %s102
      %s103 = sphi 0, %s100
      %s104 = sphi 0, %s103
      %s120 = sphi 0, %s104
      %s126 = sphi 0, %s128
      %s129 = sphi 0, %s126
      %s130 = sphi 0, %s129
      %s146 = sphi 0, %s130
    $region4: #{tpu_custom_call.1} parent=1 // loop_header_branch
      %20 = sbr.rel (%p18) target = $region8
    $region5: #{tpu_custom_call.1} parent=1 // loop_body
      %s22 = ssub.s32 %s17, 1
      %s23 = ssub.s32 %s17, 2
      %s24 = sadd.s32 %s17, 1
      %s26 = sadd.s32 %s25, 1
      %p29 = scmp.eq.s32.totalorder %s17, 1
      %p30 = scmp.ne.s32.totalorder %s25, %s27
      %p31 = scmp.eq.s32.totalorder %s17, 0
      %p32 = por %p30, %p31
      %p33 = scmp.ne.s32.totalorder %s25, %s27
      %p34 = scmp.eq.s32.totalorder %s22, 1
      %p35 = por %p33, %p34
      %p36 = scmp.ne.s32.totalorder %s27, %s28
      %p37 = scmp.eq.s32.totalorder %s22, 0
      %p38 = por %p36, %p37
      %p39 = scmp.ne.s32.totalorder %s27, %s28
      %p40 = scmp.eq.s32.totalorder %s23, 1
      %p41 = por %p39, %p40
      %p43 = scmp.ne.s32.totalorder %s28, %s42
      %p44 = scmp.eq.s32.totalorder %s23, 0
      %p45 = por %p43, %p44
      %s46 = ssub.s32 %s17, %s24
      %p47 = scmp.eq.s32.totalorder %s46, 0
      %s49 = sadd.s32 %s48, 1
      %s50 = scalar_select %p47, %s48, %s49
      %p53 = pneg %p47
      %p54 = scmp.eq.s32.totalorder %s17, 1
      %p55 = por %p53, %p54
      %p56 = scmp.ne.s32.totalorder %s48, %s51
      %p57 = scmp.eq.s32.totalorder %s17, 0
      %p58 = por %p56, %p57
      %p59 = scmp.ne.s32.totalorder %s48, %s51
      %p60 = scmp.eq.s32.totalorder %s22, 1
      %p61 = por %p59, %p60
      %p62 = scmp.ne.s32.totalorder %s51, %s52
      %p63 = scmp.eq.s32.totalorder %s22, 0
      %p64 = por %p62, %p63
      %p65 = scmp.ne.s32.totalorder %s51, %s52
      %p66 = scmp.eq.s32.totalorder %s23, 1
      %p67 = por %p65, %p66
      %p69 = scmp.ne.s32.totalorder %s52, %s68
      %p70 = scmp.eq.s32.totalorder %s23, 0
      %p71 = por %p69, %p70
      %s72 = ssub.s32 %s17, %s24
      %p73 = scmp.eq.s32.totalorder %s72, 0
      %s75 = sadd.s32 %s74, 1
      %s76 = scalar_select %p73, %s74, %s75
      %p79 = pneg %p73
      %p80 = scmp.eq.s32.totalorder %s17, 1
      %p81 = por %p79, %p80
      %p82 = scmp.ne.s32.totalorder %s74, %s77
      %p83 = scmp.eq.s32.totalorder %s17, 0
      %p84 = por %p82, %p83
      %p85 = scmp.ne.s32.totalorder %s74, %s77
      %p86 = scmp.eq.s32.totalorder %s22, 1
      %p87 = por %p85, %p86
      %p88 = scmp.ne.s32.totalorder %s77, %s78
      %p89 = scmp.eq.s32.totalorder %s22, 0
      %p90 = por %p88, %p89
      %p91 = scmp.ne.s32.totalorder %s77, %s78
      %p92 = scmp.eq.s32.totalorder %s23, 1
      %p93 = por %p91, %p92
      %p95 = scmp.ne.s32.totalorder %s78, %s94
      %p96 = scmp.eq.s32.totalorder %s23, 0
      %p97 = por %p95, %p96
      %s98 = ssub.s32 %s17, %s24
      %p99 = scmp.eq.s32.totalorder %s98, 0
      %s101 = sadd.s32 %s100, 1
      %s102 = scalar_select %p99, %s100, %s101
      %p105 = pneg %p99
      %p106 = scmp.eq.s32.totalorder %s17, 1
      %p107 = por %p105, %p106
      %p108 = scmp.ne.s32.totalorder %s100, %s103
      %p109 = scmp.eq.s32.totalorder %s17, 0
      %p110 = por %p108, %p109
      %p111 = scmp.ne.s32.totalorder %s100, %s103
      %p112 = scmp.eq.s32.totalorder %s22, 1
      %p113 = por %p111, %p112
      %p114 = scmp.ne.s32.totalorder %s103, %s104
      %p115 = scmp.eq.s32.totalorder %s22, 0
      %p116 = por %p114, %p115
      %p117 = scmp.ne.s32.totalorder %s103, %s104
      %p118 = scmp.eq.s32.totalorder %s23, 1
      %p119 = por %p117, %p118
      %p121 = scmp.ne.s32.totalorder %s104, %s120
      %p122 = scmp.eq.s32.totalorder %s23, 0
      %p123 = por %p121, %p122
      %s124 = ssub.s32 %s17, %s24
      %p125 = scmp.eq.s32.totalorder %s124, 0
      %s127 = sadd.s32 %s126, 1
      %s128 = scalar_select %p125, %s126, %s127
      %p131 = pneg %p125
      %p132 = scmp.eq.s32.totalorder %s17, 1
      %p133 = por %p131, %p132
      %p134 = scmp.ne.s32.totalorder %s126, %s129
      %p135 = scmp.eq.s32.totalorder %s17, 0
      %p136 = por %p134, %p135
      %p137 = scmp.ne.s32.totalorder %s126, %s129
      %p138 = scmp.eq.s32.totalorder %s22, 1
      %p139 = por %p137, %p138
      %p140 = scmp.ne.s32.totalorder %s129, %s130
      %p141 = scmp.eq.s32.totalorder %s22, 0
      %p142 = por %p140, %p141
      %p143 = scmp.ne.s32.totalorder %s129, %s130
      %p144 = scmp.eq.s32.totalorder %s23, 1
      %p145 = por %p143, %p144
      %p147 = scmp.ne.s32.totalorder %s130, %s146
      %p148 = scmp.eq.s32.totalorder %s23, 0
      %p149 = por %p147, %p148
      %p150 = scmp.le.s32.totalorder 1, %s17
      %p151 = scmp.lt.s32.totalorder %s17, 3
      %p152 = pnand %p150, %p151
      %p153 = pneg %p152
      // Predicated region
      $region9: #{tpu_custom_call.1} parent=5 // pred_check
        _
      $region10: #{tpu_custom_call.1} parent=5 // pred_check_branch
        %155 = sbr.rel (%p152) target = $region12
      $region11: #{tpu_custom_call.1} parent=5 // pred_region
        %s156 = ssub.s32 %s17, 1
        // Predicated region
        $region13: #{tpu_custom_call.1} parent=11 // pred_check
          %p157 = pneg %p38
        $region14: #{tpu_custom_call.1} parent=11 // pred_check_branch
          %159 = sbr.rel (%p157) target = $region16
        $region15: #{tpu_custom_call.1} parent=11 // pred_region
          %s161 = ssub.s32 64, 64
          %162 = vsyncadd [#allocation3], %s161
          %s164 = sshll.u32 [#allocation2], 4
          %s165 = int_to_ptr.vmem [resolvable:$true] %s164
          %167 = dma.hbm_to_vmem [thread:$0]  %s0, 64, %s165, [#allocation3]
        $region16: #{tpu_custom_call.1} parent=11 // pred_fallthru
          _
      $region12: #{tpu_custom_call.1} parent=5 // pred_fallthru
        _
      %p168 = scmp.lt.s32.totalorder %s17, 2
      // Predicated region
      $region17: #{tpu_custom_call.1} parent=5 // pred_check
        %p169 = pneg %p168
      $region18: #{tpu_custom_call.1} parent=5 // pred_check_branch
        %171 = sbr.rel (%p169) target = $region20
      $region19: #{tpu_custom_call.1} parent=5 // pred_region
        // Predicated region
        $region21: #{tpu_custom_call.1} parent=19 // pred_check
          %p172 = pneg %p58
        $region22: #{tpu_custom_call.1} parent=19 // pred_check_branch
          %174 = sbr.rel (%p172) target = $region24
        $region23: #{tpu_custom_call.1} parent=19 // pred_region
          %s175 = sand.u32 %s17, 1
          %s176 = scalar_lea.sflag [#allocation6], %s175
          %s177 = sand.u32 %s48, 1
          %s178 = smul.addr %s177, 40
          %s179 = scalar_lea.vmem [#allocation5], %s178
          %s180 = smul.u32 2, %s17
          %s182 = ssub.s32 640, 640
          %183 = vsyncadd %s176, %s182
          %s184 = smul.addr %s180, 64
          %s185 = scalar_lea.hbm %s1, %s184
          %s186 = sshll.u32 %s179, 4
          %s187 = int_to_ptr.vmem [resolvable:$true] %s186
          %192 = dma.hbm_to_vmem [thread:$0]  %s185, 640, %s187, %s176, 256, 128, 8
        $region24: #{tpu_custom_call.1} parent=19 // pred_fallthru
          _
        // Predicated region
        $region25: #{tpu_custom_call.1} parent=19 // pred_check
          %p193 = pneg %p84
        $region26: #{tpu_custom_call.1} parent=19 // pred_check_branch
          %195 = sbr.rel (%p193) target = $region28
        $region27: #{tpu_custom_call.1} parent=19 // pred_region
          %s196 = sand.u32 %s17, 1
          %s197 = scalar_lea.sflag [#allocation6], %s196
          %s198 = sand.u32 %s74, 1
          %s199 = smul.addr %s198, 16
          %s200 = scalar_lea.vmem [#allocation7], %s199
          %s201 = smul.u32 2, %s17
          %s203 = ssub.s32 256, 256
          %204 = vsyncadd %s197, %s203
          %s205 = smul.addr %s201, 128
          %s206 = scalar_lea.hbm %s2, %s205
          %s208 = sshll.u32 %s200, 4
          %s209 = int_to_ptr.vmem [resolvable:$true] %s208
          %211 = dma.hbm_to_vmem [thread:$0]  %s206, 256, %s209, %s197
        $region28: #{tpu_custom_call.1} parent=19 // pred_fallthru
          _
        // Predicated region
        $region29: #{tpu_custom_call.1} parent=19 // pred_check
          %p212 = pneg %p110
        $region30: #{tpu_custom_call.1} parent=19 // pred_check_branch
          %214 = sbr.rel (%p212) target = $region32
        $region31: #{tpu_custom_call.1} parent=19 // pred_region
          %s215 = smul.u32 2, %s17
          %p216 = scmp.lt.s32.totalorder %s215, 3
          %s217 = scalar_select %p216, %s215, 3
          %s218 = scalar_lea.vmem %s3, %s217
          %s219 = smul.u32 2, %s17
        $region32: #{tpu_custom_call.1} parent=19 // pred_fallthru
          _
      $region20: #{tpu_custom_call.1} parent=5 // pred_fallthru
        _
      %p220 = scmp.le.s32.totalorder 1, %s17
      %p221 = scmp.lt.s32.totalorder %s17, 3
      %p222 = pnand %p220, %p221
      %p223 = pneg %p222
      // Predicated region
      $region33: #{tpu_custom_call.1} parent=5 // pred_check
        _
      $region34: #{tpu_custom_call.1} parent=5 // pred_check_branch
        %225 = sbr.rel (%p222) target = $region36
      $region35: #{tpu_custom_call.1} parent=5 // pred_region
        %s226 = ssub.s32 %s17, 1
        // Predicated region
        $region37: #{tpu_custom_call.1} parent=35 // pred_check
          %p227 = pneg %p38
        $region38: #{tpu_custom_call.1} parent=35 // pred_check_branch
          %229 = sbr.rel (%p227) target = $region40
        $region39: #{tpu_custom_call.1} parent=35 // pred_region
          %230 = dma.done [#allocation3], 64
        $region40: #{tpu_custom_call.1} parent=35 // pred_fallthru
          _
        %s231 = sand.u32 %s22, 1
        %s232 = scalar_lea.sflag [#allocation6], %s231
        %s233 = sand.u32 %s51, 1
        %s234 = smul.addr %s233, 40
        %s235 = scalar_lea.vmem [#allocation5], %s234
        // Predicated region
        $region41: #{tpu_custom_call.1} parent=35 // pred_check
          %p236 = pneg %p64
        $region42: #{tpu_custom_call.1} parent=35 // pred_check_branch
          %238 = sbr.rel (%p236) target = $region44
        $region43: #{tpu_custom_call.1} parent=35 // pred_region
          %239 = dma.done %s232, 640
        $region44: #{tpu_custom_call.1} parent=35 // pred_fallthru
          _
        %s240 = sand.u32 %s22, 1
        %s241 = scalar_lea.sflag [#allocation6], %s240
        %s242 = sand.u32 %s77, 1
        %s243 = smul.addr %s242, 16
        %s244 = scalar_lea.vmem [#allocation7], %s243
        // Predicated region
        $region45: #{tpu_custom_call.1} parent=35 // pred_check
          %p245 = pneg %p90
        $region46: #{tpu_custom_call.1} parent=35 // pred_check_branch
          %247 = sbr.rel (%p245) target = $region48
        $region47: #{tpu_custom_call.1} parent=35 // pred_region
          %248 = dma.done %s241, 256
        $region48: #{tpu_custom_call.1} parent=35 // pred_fallthru
          _
        %p249 = pneg %p38
        %p250 = pneg %p35
        %s251 = sand.u32 %s22, 1
        %s252 = scalar_lea.sflag [#allocation6], %s251
        %s253 = sand.u32 %s51, 1
        %s254 = smul.addr %s253, 40
        %s255 = scalar_lea.vmem [#allocation5], %s254
        %p256 = pneg %p64
        %p257 = pneg %p61
        %s258 = sand.u32 %s22, 1
        %s259 = scalar_lea.sflag [#allocation6], %s258
        %s260 = sand.u32 %s77, 1
        %s261 = smul.addr %s260, 16
        %s262 = scalar_lea.vmem [#allocation7], %s261
        %p263 = pneg %p90
        %p264 = pneg %p87
        %s265 = smul.u32 2, %s22
        %p266 = scmp.lt.s32.totalorder %s265, 3
        %s267 = scalar_select %p266, %s265, 3
        %s268 = scalar_lea.vmem %s3, %s267
        %p269 = pneg %p116
        %p270 = pneg %p113
        %p271 = pneg %p142
        %p272 = pneg %p139
        %s273 = sand.u32 %s129, 1
        %s274 = scalar_lea.sflag [#allocation4], %s273
        %s275 = sand.u32 %s129, 1
        %s276 = smul.addr %s275, 16
        %s277 = scalar_lea.vmem [#allocation8], %s276
        %s278 = smul.u32 2, %s22
        %s279 = smul.u32 2, %s22
        %s280 = smul.u32 2, %s22
        %p281 = scmp.lt.s32.totalorder %s280, 3
        %s282 = scalar_select %p281, %s280, 3
        %s283 = scalar_lea.vmem %s3, %s282
        %s284 = smul.u32 2, %s22
        %s285 = smul.u32 2, %s22
        %v287 = vld [vmem:[#allocation2] sm:$0xf]
        %v288 = vld [vmem:[%s235] sm:$0xff]
        %v289 = vld [vmem:[%s235 + $0x8] sm:$0xff]
        %v290 = vld [vmem:[%s235 + $0x10] sm:$0xff]
        %v291 = vld [vmem:[%s235 + $0x18] sm:$0xff]
        %v292 = vld [vmem:[%s235 + $0x20] sm:$0x33]
        %v298 = vunpack.c.l.b16 %v288
        %v299 = vunpack.c.h.b16 %v288
        %v300 = vunpack.c.l.b16 %v289
        %v301 = vunpack.c.h.b16 %v289
        %v302 = vunpack.c.l.b16 %v290
        %v303 = vunpack.c.h.b16 %v290
        %v304 = vunpack.c.l.b16 %v291
        %v305 = vunpack.c.h.b16 %v291
        %v306 = vunpack.c.l.b16 %v292
        %v307 = vunpack.c.h.b16 %v292
        %v308 = vpack.c.b16 %v300, %v298
        %v309 = vpack.c.b16 %v301, %v299
        %v310 = vpack.c.b16 %v304, %v302
        %v311 = vpack.c.b16 %v305, %v303
        %v312 = vpack.c.b16 %v306, %v306
        %v313 = vpack.c.b16 %v307, %v307
        %vm318 = vcmask 293888
        %v320 = vsel %vm318, %v287, 0
        %vm322 = vcmask 1041408
        %v324 = vsel %vm322, %v312, 0
        %v327 = vsel %vm322, %v313, 0
        %329 = vmatprep.subr.bf16.mxu0 0
        %330 = vmatpush1.bf16.msra.mxu0 0
        %331 = vmatprep.subr.bf16.mxu0 0
        %332 = vmatpush1.bf16.msra.mxu0 0
        %333 = vmatprep.subr.bf16.mxu0 0
        %334 = vmatpush1.bf16.msra.mxu0 0
        %335 = vmatprep.subr.bf16.mxu0 0
        %336 = vmatpush1.bf16.msra.mxu0 0
        %337 = vmatprep.subr.bf16.mxu0 0
        %338 = vmatpush1.bf16.msra.mxu0 0
        %339 = vmatprep.subr.bf16.mxu0 %v327
        %340 = vmatpush1.bf16.msra.mxu0 %v324
        %341 = vmatprep.subr.bf16.mxu0 %v311
        %342 = vmatpush1.bf16.msra.mxu0 %v310
        %343 = vmatprep.subr.bf16.mxu0 %v309
        %344 = vmatpush1.bf16.msra.mxu0 %v308
        %345 = vmatprep.subr.bf16.mxu0 0
        %346 = vmatpush2.bf16.msra.mxu0 0
        %347 = vmatprep.subr.bf16.mxu0 0
        %348 = vmatpush2.bf16.msra.mxu0 0
        %349 = vmatprep.subr.bf16.mxu0 0
        %350 = vmatpush2.bf16.msra.mxu0 0
        %351 = vmatprep.subr.bf16.mxu0 0
        %352 = vmatpush2.bf16.msra.mxu0 0
        %353 = vmatprep.subr.bf16.mxu0 0
        %354 = vmatpush2.bf16.msra.mxu0 0
        %355 = vmatprep.subr.bf16.mxu0 0
        %356 = vmatpush2.bf16.msra.mxu0 0
        %357 = vmatprep.subr.bf16.mxu0 0
        %358 = vmatpush2.bf16.msra.mxu0 0
        %359 = vmatprep.subr.bf16.mxu0 0
        %360 = vmatpush2.bf16.msra.mxu0 0
        %361 = vmatprep.mubr.bf16.mxu0 0
        %362 = vmatmul.mubr.bf16.gmra.mxu0 %v320
        %v363 = vpop.f32.mrf.mxu0
        %v364 = vadd.f32 0.0, %v363
        %v365 = vpop.f32.mrf.mxu0
        %v366 = vadd.f32 0.0, %v365
        %v367 = vpop.f32.mrf.mxu0
        %v368 = vpop.f32.mrf.mxu0
        %369 = vdwg.mxu0
        %v370 = vld [vmem:[%s244] sm:$0xff]
        %v371 = vld [vmem:[%s244 + $0x8] sm:$0xff]
        %v372 = vmul.f32 %v364, %v370
        %v373 = vmul.f32 %v366, %v371
        %v374 = vld [vmem:[%s283] sm:$0x3]
        %v375 = vmul.f32 %v374, 0.1
        %v377 = vlaneseq
        %v378 = vshrl.u32 %v377, 7
        %v379 = vsub.s32 0, %v378
        %v380 = vrot.slane %v375, %v379
        %v381 = vlaneseq
        %v382 = vshrl.u32 %v381, 7
        %v383 = vsub.s32 1, %v382
        %v384 = vrot.slane %v375, %v383
        %v387 = vadd.f32 %v372, %v380
        %v388 = vadd.f32 %v373, %v384
        %vm389 = vcmp.ge.f32.partialorder %v387, 0.0
        %vm390 = vcmp.ge.f32.partialorder %v388, 0.0
        %v391 = vmul.f32 %v387, 8.0
        %v392 = vmul.f32 %v388, 8.0
        %v393 = vsel %vm389, %v387, %v391
        %v394 = vsel %vm390, %v388, %v392
        %395 = vst [vmem:[%s277] sm:$0xff] %v393
        %396 = vst [vmem:[%s277 + $0x8] sm:$0xff] %v394
        %s397 = sand.u32 %s129, 1
        %s398 = scalar_lea.sflag [#allocation4], %s397
        %s399 = sand.u32 %s129, 1
        %s400 = smul.addr %s399, 16
        %s401 = scalar_lea.vmem [#allocation8], %s400
        // Predicated region
        $region49: #{tpu_custom_call.1} parent=35 // pred_check
          %p402 = pneg %p139
        $region50: #{tpu_custom_call.1} parent=35 // pred_check_branch
          %404 = sbr.rel (%p402) target = $region52
        $region51: #{tpu_custom_call.1} parent=35 // pred_region
          %s405 = smul.u32 2, %s22
          %s407 = ssub.s32 256, 256
          %408 = vsyncadd %s398, %s407
          %s409 = smul.addr %s405, 128
          %s410 = scalar_lea.hbm %s4, %s409
          %s412 = sshll.u32 %s401, 4
          %s413 = int_to_ptr.vmem [resolvable:$true] %s412
          %415 = dma.vmem_to_hbm [thread:$0]  %s413, 256, %s410, %s398
        $region52: #{tpu_custom_call.1} parent=35 // pred_fallthru
          _
      $region36: #{tpu_custom_call.1} parent=5 // pred_fallthru
        _
      %p416 = scmp.le.s32.totalorder 2, %s17
      // Predicated region
      $region53: #{tpu_custom_call.1} parent=5 // pred_check
        %p417 = pneg %p416
      $region54: #{tpu_custom_call.1} parent=5 // pred_check_branch
        %419 = sbr.rel (%p417) target = $region56
      $region55: #{tpu_custom_call.1} parent=5 // pred_region
        %s420 = ssub.s32 %s17, 2
        // Predicated region
        $region57: #{tpu_custom_call.1} parent=55 // pred_check
          %p421 = pneg %p145
        $region58: #{tpu_custom_call.1} parent=55 // pred_check_branch
          %423 = sbr.rel (%p421) target = $region60
        $region59: #{tpu_custom_call.1} parent=55 // pred_region
          %s424 = sand.u32 %s130, 1
          %s425 = scalar_lea.sflag [#allocation4], %s424
          %s426 = sand.u32 %s130, 1
          %s427 = smul.addr %s426, 16
          %s428 = scalar_lea.vmem [#allocation8], %s427
          %429 = dma.done %s425, 256
        $region60: #{tpu_custom_call.1} parent=55 // pred_fallthru
          _
      $region56: #{tpu_custom_call.1} parent=5 // pred_fallthru
        _
    $region6: #{tpu_custom_call.1} parent=1 // loop_footer
      %s21 = sadd.s32 1, %s17
    $region7: #{tpu_custom_call.1} parent=1 // loop_footer_branch
      %16 = sbr.rel target = $region3
    $region8: #{tpu_custom_call.1} parent=1 // loop_exit
      _
    %430 = vsyncpa [#allocation3], 1
    %s431 = scalar_lea.sflag [#allocation3], 1
    %432 = vsyncpa %s431, 1
    %433 = vsyncpa [#allocation6], 1
    %s434 = scalar_lea.sflag [#allocation6], 1
    %435 = vsyncpa %s434, 1
    %436 = vsyncpa [#allocation4], 1
    %s437 = scalar_lea.sflag [#allocation4], 1
    %438 = vsyncpa %s437, 1

</llo_original>
